<compile_context>
chip_gen: v7x
topology: tpu7x:2x2x1
jax: 0.10.0
libtpu: 0.0.40
codegen_flags: <defaults>
</compile_context>

<pallas_src>
import functools

import numpy as np
import jax
import jax.numpy as jnp
from jax.experimental import pallas as pl
from jax.experimental.pallas import tpu as pltpu


def _round_up(x, m):
    return (x + m - 1) // m * m


def _vmem_capacity_bytes():
    """Per-core VMEM capacity, queried from the runtime when possible."""
    try:
        cap = int(pltpu.get_tpu_info().vmem_capacity_bytes)
        if cap > 0:
            return cap
    except Exception:
        pass
    kind = ""
    try:
        kind = jax.devices()[0].device_kind.lower()
    except Exception:
        pass
    if "v5" in kind or "v6" in kind:
        return 128 << 20          # v5e / v6e
    return 64 << 20               # v7x / unknown: be conservative


def _plan_tiles(M, K, Cout, out_bytes):
    """Chip-aware tile sizes for the (M, K) x (K, Cout) matmul."""
    vmem_cap = _vmem_capacity_bytes()
    # Ask for ~3/4 of physical VMEM (96 MiB on v5e/v6e, 48 MiB on v7x).
    vmem_limit = min((vmem_cap * 3) // 4, 96 << 20)
    budget = vmem_limit // 3      # tile working set; headroom for the compiler

    # Output channels: lane-dense (>=128 wide, unmasked stores) padded width.
    Cp = _round_up(Cout, 128)
    tn = min(512, Cp)             # 512 is a multiple of 128 (v5e) and 256 (v6e/v7x)
    Cp = _round_up(Cp, tn)

    tm = min(512, _round_up(M, 8))

    # Reduction depth: deep K tiles on 128-MiB chips (v5e/v6e), 512 on v7x.
    tk_target = 1024 if vmem_cap >= (96 << 20) else 512
    if K <= tk_target:
        # Whole reduction in one grid step.  For small-K (stem) layers pad K
        # only to a sublane multiple: a block equal to the full dim waives the
        # 128-lane rule and avoids inflating the dominant patch operand in HBM.
        Kp = _round_up(K, 8) if K < 128 else _round_up(K, 128)
        tk = Kp
    else:
        tk = tk_target
        Kp = _round_up(K, tk)

    def _bytes(tm_, tn_, tk_, kp_):
        b = 2 * (tm_ * tk_ * 2)            # patch tile (bf16), double buffered
        b += 2 * (tk_ * tn_ * 2)           # weight tile (bf16)
        b += 2 * (2 * tn_ * 4)             # fused scale/bias tile (f32)
        b += 2 * (tm_ * tn_ * out_bytes)   # output tile
        if kp_ > tk_:
            b += tm_ * tn_ * 4             # f32 accumulator scratch
        return b

    # Shrink (rarely needed at these defaults) to stay inside the VMEM budget.
    while _bytes(tm, tn, tk, Kp) > budget and tk > 256:
        tk = max(256, tk // 2)
        Kp = _round_up(K, tk)
    while _bytes(tm, tn, tk, Kp) > budget and tm > 256:
        tm = max(256, _round_up(tm // 2, 8))

    Mp = _round_up(M, tm)

    # Keep at least two blocks on the "parallel" grid axes so megacore /
    # dual-TensorCore chips (v7x) can shard the grid across cores.
    if (Mp // tm) * (Cp // tn) < 2:
        half = _round_up(max(tm // 2, 8), 8)
        if half < tm and _round_up(M, half) // half >= 2:
            tm = half
            Mp = _round_up(M, tm)

    return tm, tn, tk, Mp, Kp, Cp, int(vmem_limit)


def _bn_silu(acc, sb_ref):
    # sb_ref: (2, tn) f32 -- row 0 = gamma/sqrt(var+eps), row 1 = beta - mean*scale
    y = acc * sb_ref[0:1, :] + sb_ref[1:2, :]
    return y * jax.nn.sigmoid(y)


def conv_bn_silu_single_step_kernel(p_ref, w_ref, sb_ref, o_ref):
    # Whole K reduction in one step: no accumulator scratch, no predication.
    acc = jnp.dot(p_ref[...], w_ref[...], preferred_element_type=jnp.float32)
    o_ref[...] = _bn_silu(acc, sb_ref).astype(o_ref.dtype)


def conv_bn_silu_multi_step_kernel(p_ref, w_ref, sb_ref, o_ref, acc_ref):
    k = pl.program_id(2)

    @pl.when(k == 0)
    def _():
        acc_ref[...] = jnp.zeros_like(acc_ref)

    acc_ref[...] += jnp.dot(p_ref[...], w_ref[...],
                            preferred_element_type=jnp.float32)

    @pl.when(k == pl.num_programs(2) - 1)
    def _():
        o_ref[...] = _bn_silu(acc_ref[...], sb_ref).astype(o_ref.dtype)


@functools.partial(jax.jit,
                   static_argnames=("ksize", "stride", "eps", "out_dtype"))
def base_conv_forward_nhwc(x, weight, gamma, beta, running_mean, running_var,
                           *, ksize, stride, eps=1e-5, out_dtype=None):
    """BaseConv forward on NHWC input.  Returns NHWC.  groups=1, act='silu'."""
    N, H, W, Cin = x.shape
    Cout = weight.shape[0]
    pad = (ksize - 1) // 2
    out_dtype = out_dtype if out_dtype is not None else x.dtype

    Ho = (H + 2 * pad - ksize) // stride + 1
    Wo = (W + 2 * pad - ksize) // stride + 1

    # --- glue (plain JAX, fused under jit): pad + im2col in bf16 ---
    # TODO(synk): fold the k*k taps into the kernel reduction for Cin*k*k >= 128.
    xq = x.astype(jnp.bfloat16)
    xp = jnp.pad(xq, ((0, 0), (pad, pad), (pad, pad), (0, 0)))
    cols = [xp[:, dh:dh + stride * (Ho - 1) + 1:stride,
               dw:dw + stride * (Wo - 1) + 1:stride, :]
            for dh in range(ksize) for dw in range(ksize)]
    patches = jnp.concatenate(cols, axis=-1).reshape(N * Ho * Wo,
                                                     ksize * ksize * Cin)

    # weight (Cout, Cin, kh, kw) -> (kh, kw, Cin, Cout) -> (k*k*Cin, Cout)
    w2d = jnp.transpose(weight, (2, 3, 1, 0)).reshape(
        ksize * ksize * Cin, Cout).astype(jnp.bfloat16)

    # fused inference BatchNorm parameters, packed as one (2, Cout) operand
    inv_std = (gamma / jnp.sqrt(running_var + eps)).astype(jnp.float32)
    sb = jnp.stack(
        [inv_std,
         beta.astype(jnp.float32) - running_mean.astype(jnp.float32) * inv_std],
        axis=0)

    M, K = patches.shape
    out_bytes = np.dtype(out_dtype).itemsize
    tm, tn, tk, Mp, Kp, Cp, vmem_limit = _plan_tiles(M, K, Cout, out_bytes)

    # zero-pad to tile boundaries (padded K columns contribute 0; padded M rows
    # and Cout columns are sliced off after the kernel).
    patches_p = jnp.pad(patches, ((0, Mp - M), (0, Kp - K)))
    w_p = jnp.pad(w2d, ((0, Kp - K), (0, Cp - Cout)))
    sb_p = jnp.pad(sb, ((0, 0), (0, Cp - Cout)))

    if Kp == tk:
        kernel = conv_bn_silu_single_step_kernel
        grid = (Mp // tm, Cp // tn)
        in_specs = [
            pl.BlockSpec((tm, Kp), lambda i, j: (i, 0)),
            pl.BlockSpec((Kp, tn), lambda i, j: (0, j)),
            pl.BlockSpec((2, tn), lambda i, j: (0, j)),
        ]
        out_specs = pl.BlockSpec((tm, tn), lambda i, j: (i, j))
        scratch_shapes = []
        dim_sem = ("parallel", "parallel")
    else:
        kernel = conv_bn_silu_multi_step_kernel
        grid = (Mp // tm, Cp // tn, Kp // tk)
        in_specs = [
            pl.BlockSpec((tm, tk), lambda i, j, k: (i, k)),
            pl.BlockSpec((tk, tn), lambda i, j, k: (k, j)),
            pl.BlockSpec((2, tn), lambda i, j, k: (0, j)),
        ]
        out_specs = pl.BlockSpec((tm, tn), lambda i, j, k: (i, j))
        scratch_shapes = [pltpu.VMEM((tm, tn), jnp.float32)]
        dim_sem = ("parallel", "parallel", "arbitrary")

    out = pl.pallas_call(
        kernel,
        out_shape=jax.ShapeDtypeStruct((Mp, Cp), out_dtype),
        grid_spec=pltpu.PrefetchScalarGridSpec(
            num_scalar_prefetch=0,
            grid=grid,
            in_specs=in_specs,
            out_specs=out_specs,
            scratch_shapes=scratch_shapes,
        ),
        compiler_params=pltpu.CompilerParams(
            dimension_semantics=dim_sem,
            vmem_limit_bytes=vmem_limit),
    )(patches_p, w_p, sb_p)

    return out[:M, :Cout].reshape(N, Ho, Wo, Cout).astype(out_dtype)


def base_conv_forward(x, weight, gamma, beta, running_mean, running_var,
                      ksize, stride, eps=1e-5, out_dtype=None):
    """PyTorch-layout wrapper: x is (N, C, H, W); returns NCHW.

    Layout conversion only happens here; a whole network should call
    base_conv_forward_nhwc directly and convert layout once at model I/O.
    """
    x_nhwc = jnp.transpose(x, (0, 2, 3, 1))
    y = base_conv_forward_nhwc(x_nhwc, weight, gamma, beta,
                               running_mean, running_var,
                               ksize=ksize, stride=stride, eps=eps,
                               out_dtype=out_dtype)
    return jnp.transpose(y, (0, 3, 1, 2))


def reference_forward(x, weight, gamma, beta, running_mean, running_var,
                      ksize, stride, eps=1e-5):
    """Pure-JAX reference (conv + eval-mode BN + SiLU) for verification.

    Inputs are quantized to bf16 (matching the kernel's MXU operand dtype) and
    the conv is run in f32 HIGHEST precision, so the comparison isolates
    accumulation-order differences only.
    """
    pad = (ksize - 1) // 2
    xq = x.astype(jnp.bfloat16).astype(jnp.float32)
    wq = weight.astype(jnp.bfloat16).astype(jnp.float32)
    y = jax.lax.conv_general_dilated(
        xq, wq, window_strides=(stride, stride),
        padding=[(pad, pad), (pad, pad)],
        dimension_numbers=('NCHW', 'OIHW', 'NCHW'),
        precision=jax.lax.Precision.HIGHEST)
    inv_std = gamma / jnp.sqrt(running_var + eps)
    scale = inv_std.reshape(1, -1, 1, 1)
    bias = (beta - running_mean * inv_std).reshape(1, -1, 1, 1)
    y = y * scale + bias
    return y * jax.nn.sigmoid(y)


if __name__ == "__main__":
    # BaseConv(in_channels=4, out_channels=8, ksize=3, stride=1)
    N, Cin, H, W = 2, 4, 16, 16
    Cout, ksize, stride = 8, 3, 1

    key = jax.random.PRNGKey(0)
    kx, kw, kg, kb, km, kv = jax.random.split(key, 6)

    x = jax.random.normal(kx, (N, Cin, H, W), dtype=jnp.float32)
    weight = jax.random.normal(kw, (Cout, Cin, ksize, ksize), dtype=jnp.float32) * 0.1
    gamma = 1.0 + 0.1 * jax.random.normal(kg, (Cout,), dtype=jnp.float32)
    beta = 0.1 * jax.random.normal(kb, (Cout,), dtype=jnp.float32)
    running_mean = 0.1 * jax.random.normal(km, (Cout,), dtype=jnp.float32)
    running_var = jax.random.uniform(kv, (Cout,), dtype=jnp.float32,
                                     minval=0.5, maxval=1.5)

    out = base_conv_forward(x, weight, gamma, beta, running_mean, running_var,
                            ksize, stride)
    out = jax.block_until_ready(out)

    ref = reference_forward(x, weight, gamma, beta, running_mean, running_var,
                            ksize, stride)
    ref = jax.block_until_ready(ref)

    assert out.shape == (N, Cout, H, W), out.shape
    max_err = float(jnp.max(jnp.abs(out - ref)))
    assert jnp.allclose(out, ref, atol=2e-3, rtol=2e-3), max_err

    print("KERNEL_OK")
</pallas_src>

<mosaic_0001>
module attributes {stable_mosaic.version = 11 : i64} {
  func.func @conv_bn_silu_single_step_kernel(%arg0: i32, %arg1: i32, %arg2: memref<256x40xbf16, #tpu.memory_space<vmem>>, %arg3: memref<40x128xbf16, #tpu.memory_space<vmem>>, %arg4: memref<2x128xf32, #tpu.memory_space<vmem>>, %arg5: memref<256x128xf32, #tpu.memory_space<vmem>>) attributes {dimension_semantics = [#tpu.dimension_semantics<parallel>, #tpu.dimension_semantics<parallel>], iteration_bounds = array<i64: 2, 1>, scalar_prefetch = 0 : i64, scratch_operands = 0 : i64, tpu.core_type = #tpu.core_type<tc>, window_params = [{transform_indices = @transform_0, window_bounds = array<i64: 256, 40>}, {transform_indices = @transform_1, window_bounds = array<i64: 40, 128>}, {transform_indices = @transform_2, window_bounds = array<i64: 2, 128>}, {transform_indices = @transform_3, window_bounds = array<i64: 256, 128>}]} {
    %c0 = arith.constant 0 : index
    %c0_0 = arith.constant 0 : index
    %0 = vector.load %arg2[%c0, %c0_0] : memref<256x40xbf16, #tpu.memory_space<vmem>>, vector<256x40xbf16>
    %c0_1 = arith.constant 0 : index
    %c0_2 = arith.constant 0 : index
    %1 = vector.load %arg3[%c0_1, %c0_2] : memref<40x128xbf16, #tpu.memory_space<vmem>>, vector<40x128xbf16>
    %cst = arith.constant dense<0.000000e+00> : vector<256x128xf32>
    %2 = tpu.matmul %0, %1, %cst {dimension_numbers = #tpu.dot_dimension_numbers<[1], [0], [0], [1], [0, 0, 1, 1], [], []>} : vector<256x40xbf16>, vector<40x128xbf16>, vector<256x128xf32> -> vector<256x128xf32>
    %c0_3 = arith.constant 0 : index
    %c0_4 = arith.constant 0 : index
    %3 = vector.load %arg4[%c0_3, %c0_4] : memref<2x128xf32, #tpu.memory_space<vmem>>, vector<1x128xf32>
    %4 = vector.broadcast %3 : vector<1x128xf32> to vector<256x128xf32>
    %5 = arith.mulf %2, %4 : vector<256x128xf32>
    %c1 = arith.constant 1 : index
    %c0_5 = arith.constant 0 : index
    %6 = vector.load %arg4[%c1, %c0_5] : memref<2x128xf32, #tpu.memory_space<vmem>>, vector<1x128xf32>
    %7 = vector.broadcast %6 : vector<1x128xf32> to vector<256x128xf32>
    %8 = arith.addf %5, %7 : vector<256x128xf32>
    %9 = arith.negf %8 : vector<256x128xf32>
    %10 = math.exp %9 : vector<256x128xf32>
    %cst_6 = arith.constant 1.000000e+00 : f32
    %11 = vector.broadcast %cst_6 : f32 to vector<256x128xf32>
    %12 = arith.addf %11, %10 : vector<256x128xf32>
    %13 = arith.divf %11, %12 : vector<256x128xf32>
    %14 = arith.mulf %8, %13 : vector<256x128xf32>
    %c0_7 = arith.constant 0 : index
    %c0_8 = arith.constant 0 : index
    %15 = vector.load %arg5[%c0_7, %c0_8] : memref<256x128xf32, #tpu.memory_space<vmem>>, vector<256x128xf32>
    tpu.vector_store %arg5[%c0_7, %c0_8], %14 {strides = array<i32>} : memref<256x128xf32, #tpu.memory_space<vmem>>, vector<256x128xf32>,
    return
  }
  func.func @transform_0(%arg0: i32, %arg1: i32) -> (i32, i32) {
    %c0_i32 = arith.constant 0 : i32
    %c0_i32_0 = arith.constant 0 : i32
    return %arg0, %c0_i32 : i32, i32
  }
  func.func @transform_1(%arg0: i32, %arg1: i32) -> (i32, i32) {
    %c0_i32 = arith.constant 0 : i32
    %c0_i32_0 = arith.constant 0 : i32
    return %c0_i32, %arg1 : i32, i32
  }
  func.func @transform_2(%arg0: i32, %arg1: i32) -> (i32, i32) {
    %c0_i32 = arith.constant 0 : i32
    %c0_i32_0 = arith.constant 0 : i32
    return %c0_i32, %arg1 : i32, i32
  }
  func.func @transform_3(%arg0: i32, %arg1: i32) -> (i32, i32) {
    %c0_i32 = arith.constant 0 : i32
    return %arg0, %arg1 : i32, i32
  }
}

</mosaic_0001>

<llo_original>
// kernel: base_conv_forward_nhwc.1
$region0: #{base_conv_forward_nhwc.1}
  #allocation0 [shape = 'u32[]', space=smem, size = 0x4, offset = 0x4, fixed_abs, tag = 'smem constant byte address 0x4 - core index']
  #allocation1 [shape = 'u32[144,128]{1,0:T(1,128)}', space=vmem, size = 0x12000, scoped, tag = 'internal scratch']
  %s0 = inlined_call_operand.vmem [shape: bf16[512,40], index: 0, kind: input, shape index: {}]
  %s1 = inlined_call_operand.vmem [shape: bf16[40,128], index: 1, kind: input, shape index: {}]
  %s2 = inlined_call_operand.vmem [shape: f32[2,128], index: 2, kind: input, shape index: {}]
  %s3 = inlined_call_operand.vmem [shape: f32[512,128], index: 3, kind: output, shape index: {}]
  %s4 = sld [smem:[#allocation0]]
  $region45: #{base_conv_forward_nhwc.1} parent=0
    _
  %s6 = ssub.s32 1, %s4
  %s7 = scalar_select 0, %s6, %s4
  loop: start=0, step=1, limit=4
  $region2: #{base_conv_forward_nhwc.1} parent=0 // loop_pre_header
    _
  $region3: #{base_conv_forward_nhwc.1} parent=0 // loop_header
    %s9 = sphi 0, %s13
    %p10 = scmp.ge.s32.totalorder %s9, 4
    %s16 = sphi 0, %s28
    %s17 = sphi 0, %s24
    %s18 = sphi 0, %s16
    %s19 = sphi 0, %s17
    %s20 = sphi 0, %s18
    %s21 = sphi 0, %s19
    %s31 = sphi 0, %s33
    %s34 = sphi 0, %s31
    %s35 = sphi 0, %s34
    %s51 = sphi 0, %s35
    %s57 = sphi 0, %s59
    %s60 = sphi 0, %s57
    %s61 = sphi 0, %s60
    %s77 = sphi 0, %s61
    %s83 = sphi 0, %s85
    %s86 = sphi 0, %s83
    %s87 = sphi 0, %s86
    %s103 = sphi 0, %s87
    %s111 = sphi 0, %s113
    %s114 = sphi 0, %s111
    %s115 = sphi 0, %s114
    %s131 = sphi 0, %s115
  $region4: #{base_conv_forward_nhwc.1} parent=0 // loop_header_branch
    %12 = sbr.rel (%p10) target = $region8
  $region5: #{base_conv_forward_nhwc.1} parent=0 // loop_body
    %s14 = ssub.s32 %s9, 1
    %s15 = ssub.s32 %s9, 2
    %s22 = sadd.s32 1, %s17
    %p23 = scmp.ge.s32.totalorder %s22, 1
    %s24 = scalar_select %p23, 0, %s22
    %s25 = sadd.s32 1, %s16
    %s26 = scalar_select %p23, %s25, %s16
    %p27 = scmp.ge.s32.totalorder %s26, 2
    %s28 = scalar_select %p27, 0, %s26
    %s29 = ssub.s32 %s16, %s28
    %p30 = scmp.eq.s32.totalorder %s29, 0
    %s32 = sadd.s32 %s31, 1
    %s33 = scalar_select %p30, %s31, %s32
    %p36 = pneg %p30
    %p37 = scmp.eq.s32.totalorder %s9, 1
    %p38 = por %p36, %p37
    %p39 = scmp.ne.s32.totalorder %s31, %s34
    %p40 = scmp.eq.s32.totalorder %s9, 0
    %p41 = por %p39, %p40
    %p42 = scmp.ne.s32.totalorder %s31, %s34
    %p43 = scmp.eq.s32.totalorder %s14, 1
    %p44 = por %p42, %p43
    %p45 = scmp.ne.s32.totalorder %s34, %s35
    %p46 = scmp.eq.s32.totalorder %s14, 0
    %p47 = por %p45, %p46
    %p48 = scmp.ne.s32.totalorder %s34, %s35
    %p49 = scmp.eq.s32.totalorder %s15, 1
    %p50 = por %p48, %p49
    %p52 = scmp.ne.s32.totalorder %s35, %s51
    %p53 = scmp.eq.s32.totalorder %s15, 0
    %p54 = por %p52, %p53
    %s55 = ssub.s32 %s17, %s24
    %p56 = scmp.eq.s32.totalorder %s55, 0
    %s58 = sadd.s32 %s57, 1
    %s59 = scalar_select %p56, %s57, %s58
    %p62 = pneg %p56
    %p63 = scmp.eq.s32.totalorder %s9, 1
    %p64 = por %p62, %p63
    %p65 = scmp.ne.s32.totalorder %s57, %s60
    %p66 = scmp.eq.s32.totalorder %s9, 0
    %p67 = por %p65, %p66
    %p68 = scmp.ne.s32.totalorder %s57, %s60
    %p69 = scmp.eq.s32.totalorder %s14, 1
    %p70 = por %p68, %p69
    %p71 = scmp.ne.s32.totalorder %s60, %s61
    %p72 = scmp.eq.s32.totalorder %s14, 0
    %p73 = por %p71, %p72
    %p74 = scmp.ne.s32.totalorder %s60, %s61
    %p75 = scmp.eq.s32.totalorder %s15, 1
    %p76 = por %p74, %p75
    %p78 = scmp.ne.s32.totalorder %s61, %s77
    %p79 = scmp.eq.s32.totalorder %s15, 0
    %p80 = por %p78, %p79
    %s81 = ssub.s32 %s17, %s24
    %p82 = scmp.eq.s32.totalorder %s81, 0
    %s84 = sadd.s32 %s83, 1
    %s85 = scalar_select %p82, %s83, %s84
    %p88 = pneg %p82
    %p89 = scmp.eq.s32.totalorder %s9, 1
    %p90 = por %p88, %p89
    %p91 = scmp.ne.s32.totalorder %s83, %s86
    %p92 = scmp.eq.s32.totalorder %s9, 0
    %p93 = por %p91, %p92
    %p94 = scmp.ne.s32.totalorder %s83, %s86
    %p95 = scmp.eq.s32.totalorder %s14, 1
    %p96 = por %p94, %p95
    %p97 = scmp.ne.s32.totalorder %s86, %s87
    %p98 = scmp.eq.s32.totalorder %s14, 0
    %p99 = por %p97, %p98
    %p100 = scmp.ne.s32.totalorder %s86, %s87
    %p101 = scmp.eq.s32.totalorder %s15, 1
    %p102 = por %p100, %p101
    %p104 = scmp.ne.s32.totalorder %s87, %s103
    %p105 = scmp.eq.s32.totalorder %s15, 0
    %p106 = por %p104, %p105
    %s107 = ssub.s32 %s16, %s28
    %s108 = ssub.s32 %s17, %s24
    %s109 = sor.u32 %s107, %s108
    %p110 = scmp.eq.s32.totalorder %s109, 0
    %s112 = sadd.s32 %s111, 1
    %s113 = scalar_select %p110, %s111, %s112
    %p116 = pneg %p110
    %p117 = scmp.eq.s32.totalorder %s9, 1
    %p118 = por %p116, %p117
    %p119 = scmp.ne.s32.totalorder %s111, %s114
    %p120 = scmp.eq.s32.totalorder %s9, 0
    %p121 = por %p119, %p120
    %p122 = scmp.ne.s32.totalorder %s111, %s114
    %p123 = scmp.eq.s32.totalorder %s14, 1
    %p124 = por %p122, %p123
    %p125 = scmp.ne.s32.totalorder %s114, %s115
    %p126 = scmp.eq.s32.totalorder %s14, 0
    %p127 = por %p125, %p126
    %p128 = scmp.ne.s32.totalorder %s114, %s115
    %p129 = scmp.eq.s32.totalorder %s15, 1
    %p130 = por %p128, %p129
    %p132 = scmp.ne.s32.totalorder %s115, %s131
    %p133 = scmp.eq.s32.totalorder %s15, 0
    %p134 = por %p132, %p133
    %p135 = scmp.le.s32.totalorder 1, %s9
    %p136 = scmp.lt.s32.totalorder %s9, 3
    %p137 = pnand %p135, %p136
    %p138 = pneg %p137
    // Predicated region
    $region9: #{base_conv_forward_nhwc.1} parent=5 // pred_check
      _
    $region10: #{base_conv_forward_nhwc.1} parent=5 // pred_check_branch
      %140 = sbr.rel (%p137) target = $region12
    $region11: #{base_conv_forward_nhwc.1} parent=5 // pred_region
      %s141 = ssub.s32 %s9, 1
      // Predicated region
      $region13: #{base_conv_forward_nhwc.1} parent=11 // pred_check
        %p142 = pneg %p73
      $region14: #{base_conv_forward_nhwc.1} parent=11 // pred_check_branch
        %144 = sbr.rel (%p142) target = $region16
      $region15: #{base_conv_forward_nhwc.1} parent=11 // pred_region
        %p145 = scmp.lt.s32.totalorder %s19, 0
        %s146 = scalar_select %p145, %s19, 0
        %s147 = smul.addr %s146, 4
        %s148 = scalar_lea.vmem %s1, %s147
      $region16: #{base_conv_forward_nhwc.1} parent=11 // pred_fallthru
        _
      // Predicated region
      $region17: #{base_conv_forward_nhwc.1} parent=11 // pred_check
        %p149 = pneg %p99
      $region18: #{base_conv_forward_nhwc.1} parent=11 // pred_check_branch
        %151 = sbr.rel (%p149) target = $region20
      $region19: #{base_conv_forward_nhwc.1} parent=11 // pred_region
        %p152 = scmp.lt.s32.totalorder %s19, 0
        %s153 = scalar_select %p152, %s19, 0
        %s154 = smul.addr %s153, 2
        %s155 = scalar_lea.vmem %s2, %s154
      $region20: #{base_conv_forward_nhwc.1} parent=11 // pred_fallthru
        _
    $region12: #{base_conv_forward_nhwc.1} parent=5 // pred_fallthru
      _
    %p156 = scmp.lt.s32.totalorder %s9, 2
    // Predicated region
    $region21: #{base_conv_forward_nhwc.1} parent=5 // pred_check
      %p157 = pneg %p156
    $region22: #{base_conv_forward_nhwc.1} parent=5 // pred_check_branch
      %159 = sbr.rel (%p157) target = $region24
    $region23: #{base_conv_forward_nhwc.1} parent=5 // pred_region
      // Predicated region
      $region25: #{base_conv_forward_nhwc.1} parent=23 // pred_check
        %p160 = pneg %p41
      $region26: #{base_conv_forward_nhwc.1} parent=23 // pred_check_branch
        %162 = sbr.rel (%p160) target = $region28
      $region27: #{base_conv_forward_nhwc.1} parent=23 // pred_region
        %s163 = smul.u32 32, %s16
        %p164 = scmp.lt.s32.totalorder %s163, 63
        %s165 = scalar_select %p164, %s163, 63
        %s166 = smul.addr %s165, 4
        %s167 = scalar_lea.vmem %s0, %s166
        %s168 = smul.u32 32, %s16
      $region28: #{base_conv_forward_nhwc.1} parent=23 // pred_fallthru
        _
    $region24: #{base_conv_forward_nhwc.1} parent=5 // pred_fallthru
      _
    %p169 = scmp.le.s32.totalorder 1, %s9
    %p170 = scmp.lt.s32.totalorder %s9, 3
    %p171 = pnand %p169, %p170
    %p172 = pneg %p171
    // Predicated region
    $region29: #{base_conv_forward_nhwc.1} parent=5 // pred_check
      _
    $region30: #{base_conv_forward_nhwc.1} parent=5 // pred_check_branch
      %174 = sbr.rel (%p171) target = $region32
    $region31: #{base_conv_forward_nhwc.1} parent=5 // pred_region
      %s175 = ssub.s32 %s9, 1
      %s176 = smul.u32 32, %s18
      %p177 = scmp.lt.s32.totalorder %s176, 63
      %s178 = scalar_select %p177, %s176, 63
      %s179 = smul.addr %s178, 4
      %s180 = scalar_lea.vmem %s0, %s179
      %p181 = pneg %p47
      %p182 = pneg %p44
      %p183 = scmp.lt.s32.totalorder %s19, 0
      %s184 = scalar_select %p183, %s19, 0
      %s185 = smul.addr %s184, 4
      %s186 = scalar_lea.vmem %s1, %s185
      %p187 = pneg %p73
      %p188 = pneg %p70
      %p189 = scmp.lt.s32.totalorder %s19, 0
      %s190 = scalar_select %p189, %s19, 0
      %s191 = smul.addr %s190, 2
      %s192 = scalar_lea.vmem %s2, %s191
      %p193 = pneg %p99
      %p194 = pneg %p96
      %p195 = pneg %p127
      %p196 = pneg %p124
      %s197 = smul.u32 32, %s18
      %p198 = scmp.lt.s32.totalorder %s197, 63
      %s199 = scalar_select %p198, %s197, 63
      %p200 = scmp.lt.s32.totalorder %s19, 0
      %s201 = scalar_select %p200, %s19, 0
      %s202 = sadd.s32 %s201, %s199
      %s203 = smul.addr %s202, 8
      %s204 = scalar_lea.vmem %s3, %s203
      %s205 = smul.u32 32, %s18
      %p206 = scmp.lt.s32.totalorder %s205, 63
      %s207 = scalar_select %p206, %s205, 63
      %s208 = smul.addr %s207, 4
      %s209 = scalar_lea.vmem %s0, %s208
      %s210 = smul.u32 32, %s18
      %p211 = scmp.lt.s32.totalorder %s19, 0
      %s212 = scalar_select %p211, %s19, 0
      %s213 = smul.addr %s212, 4
      %s214 = scalar_lea.vmem %s1, %s213
      %p215 = scmp.lt.s32.totalorder %s19, 0
      %s216 = scalar_select %p215, %s19, 0
      %s217 = smul.addr %s216, 2
      %s218 = scalar_lea.vmem %s2, %s217
      %s219 = smul.u32 32, %s18
      %p220 = scmp.lt.s32.totalorder %s219, 63
      %s221 = scalar_select %p220, %s219, 63
      %p222 = scmp.lt.s32.totalorder %s19, 0
      %s223 = scalar_select %p222, %s19, 0
      %s224 = sadd.s32 %s223, %s221
      %s225 = smul.addr %s224, 8
      %s226 = scalar_lea.vmem %s3, %s225
      %s227 = smul.u32 32, %s18
      %v229 = vld [vmem:[%s209] sm:$0xf]
      %v230 = vld [vmem:[%s209 + $0x4] sm:$0xf]
      %v231 = vld [vmem:[%s209 + $0x8] sm:$0xf]
      %v232 = vld [vmem:[%s209 + $0xc] sm:$0xf]
      %v233 = vld [vmem:[%s209 + $0x10] sm:$0xf]
      %v234 = vld [vmem:[%s209 + $0x14] sm:$0xf]
      %v235 = vld [vmem:[%s209 + $0x18] sm:$0xf]
      %v236 = vld [vmem:[%s209 + $0x1c] sm:$0xf]
      %v237 = vld [vmem:[%s209 + $0x20] sm:$0xf]
      %v238 = vld [vmem:[%s209 + $0x24] sm:$0xf]
      %v239 = vld [vmem:[%s209 + $0x28] sm:$0xf]
      %v240 = vld [vmem:[%s209 + $0x2c] sm:$0xf]
      %v241 = vld [vmem:[%s209 + $0x30] sm:$0xf]
      %v242 = vld [vmem:[%s209 + $0x34] sm:$0xf]
      %v243 = vld [vmem:[%s209 + $0x38] sm:$0xf]
      %v244 = vld [vmem:[%s209 + $0x3c] sm:$0xf]
      %v245 = vld [vmem:[%s209 + $0x40] sm:$0xf]
      %v246 = vld [vmem:[%s209 + $0x44] sm:$0xf]
      %v247 = vld [vmem:[%s209 + $0x48] sm:$0xf]
      %v248 = vld [vmem:[%s209 + $0x4c] sm:$0xf]
      %v249 = vld [vmem:[%s209 + $0x50] sm:$0xf]
      %v250 = vld [vmem:[%s209 + $0x54] sm:$0xf]
      %v251 = vld [vmem:[%s209 + $0x58] sm:$0xf]
      %v252 = vld [vmem:[%s209 + $0x5c] sm:$0xf]
      %v253 = vld [vmem:[%s209 + $0x60] sm:$0xf]
      %v254 = vld [vmem:[%s209 + $0x64] sm:$0xf]
      %v255 = vld [vmem:[%s209 + $0x68] sm:$0xf]
      %v256 = vld [vmem:[%s209 + $0x6c] sm:$0xf]
      %v257 = vld [vmem:[%s209 + $0x70] sm:$0xf]
      %v258 = vld [vmem:[%s209 + $0x74] sm:$0xf]
      %v259 = vld [vmem:[%s209 + $0x78] sm:$0xf]
      %v260 = vld [vmem:[%s209 + $0x7c] sm:$0xf]
      %v261 = vld [vmem:[%s214] sm:$0xf]
      %v262 = vld [vmem:[%s214 + $0x4] sm:$0xf]
      %v263 = vld [vmem:[%s214 + $0x8] sm:$0xf]
      %v264 = vld [vmem:[%s214 + $0xc] sm:$0xf]
      %v265 = vld [vmem:[%s214 + $0x10] sm:$0xf]
      %v298 = vunpack.c.l.b16 %v229
      %v299 = vunpack.c.l.b16 %v230
      %v300 = vunpack.c.l.b16 %v231
      %v301 = vunpack.c.l.b16 %v232
      %v302 = vunpack.c.l.b16 %v233
      %v303 = vunpack.c.l.b16 %v234
      %v304 = vunpack.c.l.b16 %v235
      %v305 = vunpack.c.l.b16 %v236
      %v306 = vunpack.c.l.b16 %v237
      %v307 = vunpack.c.l.b16 %v238
      %v308 = vunpack.c.l.b16 %v239
      %v309 = vunpack.c.l.b16 %v240
      %v310 = vunpack.c.l.b16 %v241
      %v311 = vunpack.c.l.b16 %v242
      %v312 = vunpack.c.l.b16 %v243
      %v313 = vunpack.c.l.b16 %v244
      %v314 = vunpack.c.l.b16 %v245
      %v315 = vunpack.c.l.b16 %v246
      %v316 = vunpack.c.l.b16 %v247
      %v317 = vunpack.c.l.b16 %v248
      %v318 = vunpack.c.l.b16 %v249
      %v319 = vunpack.c.l.b16 %v250
      %v320 = vunpack.c.l.b16 %v251
      %v321 = vunpack.c.l.b16 %v252
      %v322 = vunpack.c.l.b16 %v253
      %v323 = vunpack.c.l.b16 %v254
      %v324 = vunpack.c.l.b16 %v255
      %v325 = vunpack.c.l.b16 %v256
      %v326 = vunpack.c.l.b16 %v257
      %v327 = vunpack.c.l.b16 %v258
      %v328 = vunpack.c.l.b16 %v259
      %v329 = vunpack.c.l.b16 %v260
      %v330 = vpack.c.b16 %v299, %v298
      %v331 = vpack.c.b16 %v301, %v300
      %v332 = vpack.c.b16 %v303, %v302
      %v333 = vpack.c.b16 %v305, %v304
      %v334 = vpack.c.b16 %v307, %v306
      %v335 = vpack.c.b16 %v309, %v308
      %v336 = vpack.c.b16 %v311, %v310
      %v337 = vpack.c.b16 %v313, %v312
      %v338 = vpack.c.b16 %v315, %v314
      %v339 = vpack.c.b16 %v317, %v316
      %v340 = vpack.c.b16 %v319, %v318
      %v341 = vpack.c.b16 %v321, %v320
      %v342 = vpack.c.b16 %v323, %v322
      %v343 = vpack.c.b16 %v325, %v324
      %v344 = vpack.c.b16 %v327, %v326
      %v345 = vpack.c.b16 %v329, %v328
      %v351 = vunpack.c.l.b16 %v261
      %v352 = vunpack.c.l.b16 %v262
      %v353 = vunpack.c.l.b16 %v263
      %v354 = vunpack.c.l.b16 %v264
      %v355 = vunpack.c.l.b16 %v265
      %v356 = vpack.c.b16 %v352, %v351
      %v357 = vpack.c.b16 %v354, %v353
      %v358 = vpack.c.b16 %v355, %v355
      %vm361 = vcmask 326656
      %v363 = vsel %vm361, %v330, 0
      %v366 = vsel %vm361, %v331, 0
      %v369 = vsel %vm361, %v332, 0
      %v372 = vsel %vm361, %v333, 0
      %v375 = vsel %vm361, %v334, 0
      %v378 = vsel %vm361, %v335, 0
      %v381 = vsel %vm361, %v336, 0
      %v384 = vsel %vm361, %v337, 0
      %v387 = vsel %vm361, %v338, 0
      %v390 = vsel %vm361, %v339, 0
      %v393 = vsel %vm361, %v340, 0
      %v396 = vsel %vm361, %v341, 0
      %v399 = vsel %vm361, %v342, 0
      %v402 = vsel %vm361, %v343, 0
      %v405 = vsel %vm361, %v344, 0
      %v408 = vsel %vm361, %v345, 0
      %vm410 = vcmask 1043456
      %v412 = vsel %vm410, %v358, 0
      %414 = vmatprep.subr.bf16.mxu0 0
      %415 = vmatpush1.bf16.msra.mxu0 %v356
      %416 = vmatprep.subr.bf16.mxu0 0
      %417 = vmatpush1.bf16.msra.mxu0 %v357
      %418 = vmatprep.subr.bf16.mxu0 0
      %419 = vmatpush1.bf16.msra.mxu0 %v412
      %420 = vmatprep.subr.bf16.mxu0 0
      %421 = vmatpush1.bf16.msra.mxu0 0
      %422 = vmatprep.subr.bf16.mxu0 0
      %423 = vmatpush1.bf16.msra.mxu0 0
      %424 = vmatprep.subr.bf16.mxu0 0
      %425 = vmatpush1.bf16.msra.mxu0 0
      %426 = vmatprep.subr.bf16.mxu0 0
      %427 = vmatpush1.bf16.msra.mxu0 0
      %428 = vmatprep.subr.bf16.mxu0 0
      %429 = vmatpush1.bf16.msra.mxu0 0
      %430 = vmatprep.subr.bf16.mxu0 0
      %431 = vmatpush1.bf16.msra.mxu0 0
      %432 = vmatprep.subr.bf16.mxu0 0
      %433 = vmatpush1.bf16.msra.mxu0 0
      %434 = vmatprep.subr.bf16.mxu0 0
      %435 = vmatpush1.bf16.msra.mxu0 0
      %436 = vmatprep.subr.bf16.mxu0 0
      %437 = vmatpush1.bf16.msra.mxu0 0
      %438 = vmatprep.subr.bf16.mxu0 0
      %439 = vmatpush1.bf16.msra.mxu0 0
      %440 = vmatprep.subr.bf16.mxu0 0
      %441 = vmatpush1.bf16.msra.mxu0 0
      %442 = vmatprep.subr.bf16.mxu0 0
      %443 = vmatpush1.bf16.msra.mxu0 0
      %444 = vmatprep.subr.bf16.mxu0 0
      %445 = vmatpush1.bf16.msra.mxu0 0
      %446 = vmatprep.mubr.bf16.mxu0 0
      %447 = vmatmul.mubr.bf16.gmra.mrb[0].mxu0 %v363
      %v448 = vpop.f32.mrb[0].mxu0
      %v449 = vadd.f32 0.0, %v448
      %v450 = vpop.f32.mrb[0].mxu0
      %v451 = vpop.f32.mrb[0].mxu0
      %v452 = vadd.f32 0.0, %v451
      %v453 = vpop.f32.mrb[0].mxu0
      %454 = vmatprep.mubr.bf16.mxu0 0
      %455 = vmatmul.mubr.bf16.gmra.mrb[0].mxu0 %v366
      %v456 = vpop.f32.mrb[0].mxu0
      %v457 = vadd.f32 0.0, %v456
      %v458 = vpop.f32.mrb[0].mxu0
      %v459 = vpop.f32.mrb[0].mxu0
      %v460 = vadd.f32 0.0, %v459
      %v461 = vpop.f32.mrb[0].mxu0
      %462 = vmatprep.mubr.bf16.mxu0 0
      %463 = vmatmul.mubr.bf16.gmra.mrb[0].mxu0 %v369
      %v464 = vpop.f32.mrb[0].mxu0
      %v465 = vadd.f32 0.0, %v464
      %v466 = vpop.f32.mrb[0].mxu0
      %v467 = vpop.f32.mrb[0].mxu0
      %v468 = vadd.f32 0.0, %v467
      %v469 = vpop.f32.mrb[0].mxu0
      %470 = vmatprep.mubr.bf16.mxu0 0
      %471 = vmatmul.mubr.bf16.gmra.mrb[0].mxu0 %v372
      %v472 = vpop.f32.mrb[0].mxu0
      %v473 = vadd.f32 0.0, %v472
      %v474 = vpop.f32.mrb[0].mxu0
      %v475 = vpop.f32.mrb[0].mxu0
      %v476 = vadd.f32 0.0, %v475
      %v477 = vpop.f32.mrb[0].mxu0
      %478 = vmatprep.mubr.bf16.mxu0 0
      %479 = vmatmul.mubr.bf16.gmra.mrb[0].mxu0 %v375
      %v480 = vpop.f32.mrb[0].mxu0
      %v481 = vadd.f32 0.0, %v480
      %v482 = vpop.f32.mrb[0].mxu0
      %v483 = vpop.f32.mrb[0].mxu0
      %v484 = vadd.f32 0.0, %v483
      %v485 = vpop.f32.mrb[0].mxu0
      %486 = vmatprep.mubr.bf16.mxu0 0
      %487 = vmatmul.mubr.bf16.gmra.mrb[0].mxu0 %v378
      %v488 = vpop.f32.mrb[0].mxu0
      %v489 = vadd.f32 0.0, %v488
      %v490 = vpop.f32.mrb[0].mxu0
      %v491 = vpop.f32.mrb[0].mxu0
      %v492 = vadd.f32 0.0, %v491
      %v493 = vpop.f32.mrb[0].mxu0
      %494 = vmatprep.mubr.bf16.mxu0 0
      %495 = vmatmul.mubr.bf16.gmra.mrb[0].mxu0 %v381
      %v496 = vpop.f32.mrb[0].mxu0
      %v497 = vadd.f32 0.0, %v496
      %v498 = vpop.f32.mrb[0].mxu0
      %v499 = vpop.f32.mrb[0].mxu0
      %v500 = vadd.f32 0.0, %v499
      %v501 = vpop.f32.mrb[0].mxu0
      %502 = vmatprep.mubr.bf16.mxu0 0
      %503 = vmatmul.mubr.bf16.gmra.mrb[0].mxu0 %v384
      %v504 = vpop.f32.mrb[0].mxu0
      %v505 = vadd.f32 0.0, %v504
      %v506 = vpop.f32.mrb[0].mxu0
      %v507 = vpop.f32.mrb[0].mxu0
      %v508 = vadd.f32 0.0, %v507
      %v509 = vpop.f32.mrb[0].mxu0
      %510 = vmatprep.mubr.bf16.mxu0 0
      %511 = vmatmul.mubr.bf16.gmra.mrb[0].mxu0 %v387
      %v512 = vpop.f32.mrb[0].mxu0
      %v513 = vadd.f32 0.0, %v512
      %v514 = vpop.f32.mrb[0].mxu0
      %v515 = vpop.f32.mrb[0].mxu0
      %v516 = vadd.f32 0.0, %v515
      %v517 = vpop.f32.mrb[0].mxu0
      %518 = vmatprep.mubr.bf16.mxu0 0
      %519 = vmatmul.mubr.bf16.gmra.mrb[0].mxu0 %v390
      %v520 = vpop.f32.mrb[0].mxu0
      %v521 = vadd.f32 0.0, %v520
      %v522 = vpop.f32.mrb[0].mxu0
      %v523 = vpop.f32.mrb[0].mxu0
      %v524 = vadd.f32 0.0, %v523
      %v525 = vpop.f32.mrb[0].mxu0
      %526 = vmatprep.mubr.bf16.mxu0 0
      %527 = vmatmul.mubr.bf16.gmra.mrb[0].mxu0 %v393
      %v528 = vpop.f32.mrb[0].mxu0
      %v529 = vadd.f32 0.0, %v528
      %v530 = vpop.f32.mrb[0].mxu0
      %v531 = vpop.f32.mrb[0].mxu0
      %v532 = vadd.f32 0.0, %v531
      %v533 = vpop.f32.mrb[0].mxu0
      %534 = vmatprep.mubr.bf16.mxu0 0
      %535 = vmatmul.mubr.bf16.gmra.mrb[0].mxu0 %v396
      %v536 = vpop.f32.mrb[0].mxu0
      %v537 = vadd.f32 0.0, %v536
      %v538 = vpop.f32.mrb[0].mxu0
      %v539 = vpop.f32.mrb[0].mxu0
      %v540 = vadd.f32 0.0, %v539
      %v541 = vpop.f32.mrb[0].mxu0
      %542 = vmatprep.mubr.bf16.mxu0 0
      %543 = vmatmul.mubr.bf16.gmra.mrb[0].mxu0 %v399
      %v544 = vpop.f32.mrb[0].mxu0
      %v545 = vadd.f32 0.0, %v544
      %v546 = vpop.f32.mrb[0].mxu0
      %v547 = vpop.f32.mrb[0].mxu0
      %v548 = vadd.f32 0.0, %v547
      %v549 = vpop.f32.mrb[0].mxu0
      %550 = vmatprep.mubr.bf16.mxu0 0
      %551 = vmatmul.mubr.bf16.gmra.mrb[0].mxu0 %v402
      %v552 = vpop.f32.mrb[0].mxu0
      %v553 = vadd.f32 0.0, %v552
      %v554 = vpop.f32.mrb[0].mxu0
      %v555 = vpop.f32.mrb[0].mxu0
      %v556 = vadd.f32 0.0, %v555
      %v557 = vpop.f32.mrb[0].mxu0
      %558 = vmatprep.mubr.bf16.mxu0 0
      %559 = vmatmul.mubr.bf16.gmra.mrb[0].mxu0 %v405
      %v560 = vpop.f32.mrb[0].mxu0
      %v561 = vadd.f32 0.0, %v560
      %v562 = vpop.f32.mrb[0].mxu0
      %v563 = vpop.f32.mrb[0].mxu0
      %v564 = vadd.f32 0.0, %v563
      %v565 = vpop.f32.mrb[0].mxu0
      %566 = vmatprep.mubr.bf16.mxu0 0
      %567 = vmatmul.mubr.bf16.gmra.mrb[0].mxu0 %v408
      %v568 = vpop.f32.mrb[0].mxu0
      %v569 = vadd.f32 0.0, %v568
      %v570 = vpop.f32.mrb[0].mxu0
      %v571 = vpop.f32.mrb[0].mxu0
      %v572 = vadd.f32 0.0, %v571
      %v573 = vpop.f32.mrb[0].mxu0
      %574 = vdwg.mxu0
      %v575 = vld [vmem:[%s218] sm:$0x1]
      %v576 = vlaneseq
      %v577 = vshrl.u32 %v576, 7
      %v578 = vsub.s32 0, %v577
      %v579 = vrot.slane %v575, %v578
      %v580 = vmul.f32 %v449, %v579
      %v581 = vmul.f32 %v452, %v579
      %v582 = vmul.f32 %v457, %v579
      %v583 = vmul.f32 %v460, %v579
      %v584 = vmul.f32 %v465, %v579
      %v585 = vmul.f32 %v468, %v579
      %v586 = vmul.f32 %v473, %v579
      %v587 = vmul.f32 %v476, %v579
      %v588 = vmul.f32 %v481, %v579
      %v589 = vmul.f32 %v484, %v579
      %v590 = vmul.f32 %v489, %v579
      %v591 = vmul.f32 %v492, %v579
      %v592 = vmul.f32 %v497, %v579
      %v593 = vmul.f32 %v500, %v579
      %v594 = vmul.f32 %v505, %v579
      %v595 = vmul.f32 %v508, %v579
      %v596 = vmul.f32 %v513, %v579
      %v597 = vmul.f32 %v516, %v579
      %v598 = vmul.f32 %v521, %v579
      %v599 = vmul.f32 %v524, %v579
      %v600 = vmul.f32 %v529, %v579
      %v601 = vmul.f32 %v532, %v579
      %v602 = vmul.f32 %v537, %v579
      %v603 = vmul.f32 %v540, %v579
      %v604 = vmul.f32 %v545, %v579
      %v605 = vmul.f32 %v548, %v579
      %v606 = vmul.f32 %v553, %v579
      %v607 = vmul.f32 %v556, %v579
      %v608 = vmul.f32 %v561, %v579
      %v609 = vmul.f32 %v564, %v579
      %v610 = vmul.f32 %v569, %v579
      %v611 = vmul.f32 %v572, %v579
      %v612 = vld [vmem:[%s218 + $0x1] sm:$0x1]
      %v613 = vlaneseq
      %v614 = vshrl.u32 %v613, 7
      %v615 = vsub.s32 0, %v614
      %v616 = vrot.slane %v612, %v615
      %v617 = vadd.f32 %v580, %v616
      %v618 = vadd.f32 %v581, %v616
      %v619 = vadd.f32 %v582, %v616
      %v620 = vadd.f32 %v583, %v616
      %v621 = vadd.f32 %v584, %v616
      %v622 = vadd.f32 %v585, %v616
      %v623 = vadd.f32 %v586, %v616
      %v624 = vadd.f32 %v587, %v616
      %v625 = vadd.f32 %v588, %v616
      %v626 = vadd.f32 %v589, %v616
      %v627 = vadd.f32 %v590, %v616
      %v628 = vadd.f32 %v591, %v616
      %v629 = vadd.f32 %v592, %v616
      %v630 = vadd.f32 %v593, %v616
      %v631 = vadd.f32 %v594, %v616
      %v632 = vadd.f32 %v595, %v616
      %v633 = vadd.f32 %v596, %v616
      %v634 = vadd.f32 %v597, %v616
      %v635 = vadd.f32 %v598, %v616
      %v636 = vadd.f32 %v599, %v616
      %v637 = vadd.f32 %v600, %v616
      %v638 = vadd.f32 %v601, %v616
      %v639 = vadd.f32 %v602, %v616
      %v640 = vadd.f32 %v603, %v616
      %v641 = vadd.f32 %v604, %v616
      %v642 = vadd.f32 %v605, %v616
      %v643 = vadd.f32 %v606, %v616
      %v644 = vadd.f32 %v607, %v616
      %v645 = vadd.f32 %v608, %v616
      %v646 = vadd.f32 %v609, %v616
      %v647 = vadd.f32 %v610, %v616
      %v648 = vadd.f32 %v611, %v616
      %v649 = vxor.u32 %v617, 2147483648
      %v650 = vxor.u32 %v618, 2147483648
      %v651 = vxor.u32 %v619, 2147483648
      %v652 = vxor.u32 %v620, 2147483648
      %v653 = vxor.u32 %v621, 2147483648
      %v654 = vxor.u32 %v622, 2147483648
      %v655 = vxor.u32 %v623, 2147483648
      %v656 = vxor.u32 %v624, 2147483648
      %v657 = vxor.u32 %v625, 2147483648
      %v658 = vxor.u32 %v626, 2147483648
      %v659 = vxor.u32 %v627, 2147483648
      %v660 = vxor.u32 %v628, 2147483648
      %v661 = vxor.u32 %v629, 2147483648
      %v662 = vxor.u32 %v630, 2147483648
      %v663 = vxor.u32 %v631, 2147483648
      %v664 = vxor.u32 %v632, 2147483648
      %v665 = vxor.u32 %v633, 2147483648
      %v666 = vxor.u32 %v634, 2147483648
      %v667 = vxor.u32 %v635, 2147483648
      %v668 = vxor.u32 %v636, 2147483648
      %v669 = vxor.u32 %v637, 2147483648
      %v670 = vxor.u32 %v638, 2147483648
      %v671 = vxor.u32 %v639, 2147483648
      %v672 = vxor.u32 %v640, 2147483648
      %v673 = vxor.u32 %v641, 2147483648
      %v674 = vxor.u32 %v642, 2147483648
      %v675 = vxor.u32 %v643, 2147483648
      %v676 = vxor.u32 %v644, 2147483648
      %v677 = vxor.u32 %v645, 2147483648
      %v678 = vxor.u32 %v646, 2147483648
      %v679 = vxor.u32 %v647, 2147483648
      %v680 = vxor.u32 %v648, 2147483648
      %v681 = vmul.f32 %v649, 1.442695
      %v682 = vpow.pop %v681
      %v683 = vmul.f32 %v650, 1.442695
      %v684 = vpow.pop %v683
      %v685 = vmul.f32 %v651, 1.442695
      %v686 = vpow.pop %v685
      %v687 = vmul.f32 %v652, 1.442695
      %v688 = vpow.pop %v687
      %v689 = vmul.f32 %v653, 1.442695
      %v690 = vpow.pop %v689
      %v691 = vmul.f32 %v654, 1.442695
      %v692 = vpow.pop %v691
      %v693 = vmul.f32 %v655, 1.442695
      %v694 = vpow.pop %v693
      %v695 = vmul.f32 %v656, 1.442695
      %v696 = vpow.pop %v695
      %v697 = vmul.f32 %v657, 1.442695
      %v698 = vpow.pop %v697
      %v699 = vmul.f32 %v658, 1.442695
      %v700 = vpow.pop %v699
      %v701 = vmul.f32 %v659, 1.442695
      %v702 = vpow.pop %v701
      %v703 = vmul.f32 %v660, 1.442695
      %v704 = vpow.pop %v703
      %v705 = vmul.f32 %v661, 1.442695
      %v706 = vpow.pop %v705
      %v707 = vmul.f32 %v662, 1.442695
      %v708 = vpow.pop %v707
      %v709 = vmul.f32 %v663, 1.442695
      %v710 = vpow.pop %v709
      %v711 = vmul.f32 %v664, 1.442695
      %v712 = vpow.pop %v711
      %v713 = vmul.f32 %v665, 1.442695
      %v714 = vpow.pop %v713
      %v715 = vmul.f32 %v666, 1.442695
      %v716 = vpow.pop %v715
      %v717 = vmul.f32 %v667, 1.442695
      %v718 = vpow.pop %v717
      %v719 = vmul.f32 %v668, 1.442695
      %v720 = vpow.pop %v719
      %v721 = vmul.f32 %v669, 1.442695
      %v722 = vpow.pop %v721
      %v723 = vmul.f32 %v670, 1.442695
      %v724 = vpow.pop %v723
      %v725 = vmul.f32 %v671, 1.442695
      %v726 = vpow.pop %v725
      %v727 = vmul.f32 %v672, 1.442695
      %v728 = vpow.pop %v727
      %v729 = vmul.f32 %v673, 1.442695
      %v730 = vpow.pop %v729
      %v731 = vmul.f32 %v674, 1.442695
      %v732 = vpow.pop %v731
      %v733 = vmul.f32 %v675, 1.442695
      %v734 = vpow.pop %v733
      %v735 = vmul.f32 %v676, 1.442695
      %v736 = vpow.pop %v735
      %v737 = vmul.f32 %v677, 1.442695
      %v738 = vpow.pop %v737
      %v739 = vmul.f32 %v678, 1.442695
      %v740 = vpow.pop %v739
      %v741 = vmul.f32 %v679, 1.442695
      %v742 = vpow.pop %v741
      %v743 = vmul.f32 %v680, 1.442695
      %v744 = vpow.pop %v743
      %v745 = vadd.f32 %v682, 1.0
      %v746 = vadd.f32 %v684, 1.0
      %v747 = vadd.f32 %v686, 1.0
      %v748 = vadd.f32 %v688, 1.0
      %v749 = vadd.f32 %v690, 1.0
      %v750 = vadd.f32 %v692, 1.0
      %v751 = vadd.f32 %v694, 1.0
      %v752 = vadd.f32 %v696, 1.0
      %v753 = vadd.f32 %v698, 1.0
      %v754 = vadd.f32 %v700, 1.0
      %v755 = vadd.f32 %v702, 1.0
      %v756 = vadd.f32 %v704, 1.0
      %v757 = vadd.f32 %v706, 1.0
      %v758 = vadd.f32 %v708, 1.0
      %v759 = vadd.f32 %v710, 1.0
      %v760 = vadd.f32 %v712, 1.0
      %v761 = vadd.f32 %v714, 1.0
      %v762 = vadd.f32 %v716, 1.0
      %v763 = vadd.f32 %v718, 1.0
      %v764 = vadd.f32 %v720, 1.0
      %v765 = vadd.f32 %v722, 1.0
      %v766 = vadd.f32 %v724, 1.0
      %v767 = vadd.f32 %v726, 1.0
      %v768 = vadd.f32 %v728, 1.0
      %v769 = vadd.f32 %v730, 1.0
      %v770 = vadd.f32 %v732, 1.0
      %v771 = vadd.f32 %v734, 1.0
      %v772 = vadd.f32 %v736, 1.0
      %v773 = vadd.f32 %v738, 1.0
      %v774 = vadd.f32 %v740, 1.0
      %v775 = vadd.f32 %v742, 1.0
      %v776 = vadd.f32 %v744, 1.0
      %v777 = vrcp.pop %v745
      %v778 = vmul.f32 1.0, %v777
      %v779 = vrcp.pop %v746
      %v780 = vmul.f32 1.0, %v779
      %v781 = vrcp.pop %v747
      %v782 = vmul.f32 1.0, %v781
      %v783 = vrcp.pop %v748
      %v784 = vmul.f32 1.0, %v783
      %v785 = vrcp.pop %v749
      %v786 = vmul.f32 1.0, %v785
      %v787 = vrcp.pop %v750
      %v788 = vmul.f32 1.0, %v787
      %v789 = vrcp.pop %v751
      %v790 = vmul.f32 1.0, %v789
      %v791 = vrcp.pop %v752
      %v792 = vmul.f32 1.0, %v791
      %v793 = vrcp.pop %v753
      %v794 = vmul.f32 1.0, %v793
      %v795 = vrcp.pop %v754
      %v796 = vmul.f32 1.0, %v795
      %v797 = vrcp.pop %v755
      %v798 = vmul.f32 1.0, %v797
      %v799 = vrcp.pop %v756
      %v800 = vmul.f32 1.0, %v799
      %v801 = vrcp.pop %v757
      %v802 = vmul.f32 1.0, %v801
      %v803 = vrcp.pop %v758
      %v804 = vmul.f32 1.0, %v803
      %v805 = vrcp.pop %v759
      %v806 = vmul.f32 1.0, %v805
      %v807 = vrcp.pop %v760
      %v808 = vmul.f32 1.0, %v807
      %v809 = vrcp.pop %v761
      %v810 = vmul.f32 1.0, %v809
      %v811 = vrcp.pop %v762
      %v812 = vmul.f32 1.0, %v811
      %v813 = vrcp.pop %v763
      %v814 = vmul.f32 1.0, %v813
      %v815 = vrcp.pop %v764
      %v816 = vmul.f32 1.0, %v815
      %v817 = vrcp.pop %v765
      %v818 = vmul.f32 1.0, %v817
      %v819 = vrcp.pop %v766
      %v820 = vmul.f32 1.0, %v819
      %v821 = vrcp.pop %v767
      %v822 = vmul.f32 1.0, %v821
      %v823 = vrcp.pop %v768
      %v824 = vmul.f32 1.0, %v823
      %v825 = vrcp.pop %v769
      %v826 = vmul.f32 1.0, %v825
      %v827 = vrcp.pop %v770
      %v828 = vmul.f32 1.0, %v827
      %v829 = vrcp.pop %v771
      %v830 = vmul.f32 1.0, %v829
      %v831 = vrcp.pop %v772
      %v832 = vmul.f32 1.0, %v831
      %v833 = vrcp.pop %v773
      %v834 = vmul.f32 1.0, %v833
      %v835 = vrcp.pop %v774
      %v836 = vmul.f32 1.0, %v835
      %v837 = vrcp.pop %v775
      %v838 = vmul.f32 1.0, %v837
      %v839 = vrcp.pop %v776
      %v840 = vmul.f32 1.0, %v839
      %v841 = vmul.f32 %v617, %v778
      %v842 = vmul.f32 %v618, %v780
      %v843 = vmul.f32 %v619, %v782
      %v844 = vmul.f32 %v620, %v784
      %v845 = vmul.f32 %v621, %v786
      %v846 = vmul.f32 %v622, %v788
      %v847 = vmul.f32 %v623, %v790
      %v848 = vmul.f32 %v624, %v792
      %v849 = vmul.f32 %v625, %v794
      %v850 = vmul.f32 %v626, %v796
      %v851 = vmul.f32 %v627, %v798
      %v852 = vmul.f32 %v628, %v800
      %v853 = vmul.f32 %v629, %v802
      %v854 = vmul.f32 %v630, %v804
      %v855 = vmul.f32 %v631, %v806
      %v856 = vmul.f32 %v632, %v808
      %v857 = vmul.f32 %v633, %v810
      %v858 = vmul.f32 %v634, %v812
      %v859 = vmul.f32 %v635, %v814
      %v860 = vmul.f32 %v636, %v816
      %v861 = vmul.f32 %v637, %v818
      %v862 = vmul.f32 %v638, %v820
      %v863 = vmul.f32 %v639, %v822
      %v864 = vmul.f32 %v640, %v824
      %v865 = vmul.f32 %v641, %v826
      %v866 = vmul.f32 %v642, %v828
      %v867 = vmul.f32 %v643, %v830
      %v868 = vmul.f32 %v644, %v832
      %v869 = vmul.f32 %v645, %v834
      %v870 = vmul.f32 %v646, %v836
      %v871 = vmul.f32 %v647, %v838
      %v872 = vmul.f32 %v648, %v840
      %873 = vst [vmem:[%s226] sm:$0xff] %v841
      %874 = vst [vmem:[%s226 + $0x8] sm:$0xff] %v842
      %875 = vst [vmem:[%s226 + $0x10] sm:$0xff] %v843
      %876 = vst [vmem:[%s226 + $0x18] sm:$0xff] %v844
      %877 = vst [vmem:[%s226 + $0x20] sm:$0xff] %v845
      %878 = vst [vmem:[%s226 + $0x28] sm:$0xff] %v846
      %879 = vst [vmem:[%s226 + $0x30] sm:$0xff] %v847
      %880 = vst [vmem:[%s226 + $0x38] sm:$0xff] %v848
      %881 = vst [vmem:[%s226 + $0x40] sm:$0xff] %v849
      %882 = vst [vmem:[%s226 + $0x48] sm:$0xff] %v850
      %883 = vst [vmem:[%s226 + $0x50] sm:$0xff] %v851
      %884 = vst [vmem:[%s226 + $0x58] sm:$0xff] %v852
      %885 = vst [vmem:[%s226 + $0x60] sm:$0xff] %v853
      %886 = vst [vmem:[%s226 + $0x68] sm:$0xff] %v854
      %887 = vst [vmem:[%s226 + $0x70] sm:$0xff] %v855
      %888 = vst [vmem:[%s226 + $0x78] sm:$0xff] %v856
      %889 = vst [vmem:[%s226 + $0x80] sm:$0xff] %v857
      %890 = vst [vmem:[%s226 + $0x88] sm:$0xff] %v858
      %891 = vst [vmem:[%s226 + $0x90] sm:$0xff] %v859
      %892 = vst [vmem:[%s226 + $0x98] sm:$0xff] %v860
      %893 = vst [vmem:[%s226 + $0xa0] sm:$0xff] %v861
      %894 = vst [vmem:[%s226 + $0xa8] sm:$0xff] %v862
      %895 = vst [vmem:[%s226 + $0xb0] sm:$0xff] %v863
      %896 = vst [vmem:[%s226 + $0xb8] sm:$0xff] %v864
      %897 = vst [vmem:[%s226 + $0xc0] sm:$0xff] %v865
      %898 = vst [vmem:[%s226 + $0xc8] sm:$0xff] %v866
      %899 = vst [vmem:[%s226 + $0xd0] sm:$0xff] %v867
      %900 = vst [vmem:[%s226 + $0xd8] sm:$0xff] %v868
      %901 = vst [vmem:[%s226 + $0xe0] sm:$0xff] %v869
      %902 = vst [vmem:[%s226 + $0xe8] sm:$0xff] %v870
      %903 = vst [vmem:[%s226 + $0xf0] sm:$0xff] %v871
      %904 = vst [vmem:[%s226 + $0xf8] sm:$0xff] %v872
      %s905 = smul.u32 32, %s18
      %p906 = scmp.lt.s32.totalorder %s905, 63
      %s907 = scalar_select %p906, %s905, 63
      %p908 = scmp.lt.s32.totalorder %s19, 0
      %s909 = scalar_select %p908, %s19, 0
      %s910 = sadd.s32 %s909, %s907
      %s911 = smul.addr %s910, 8
      %s912 = scalar_lea.vmem %s3, %s911
      // Predicated region
      $region33: #{base_conv_forward_nhwc.1} parent=31 // pred_check
        %p913 = pneg %p124
      $region34: #{base_conv_forward_nhwc.1} parent=31 // pred_check_branch
        %915 = sbr.rel (%p913) target = $region36
      $region35: #{base_conv_forward_nhwc.1} parent=31 // pred_region
        %s916 = smul.u32 32, %s18
      $region36: #{base_conv_forward_nhwc.1} parent=31 // pred_fallthru
        _
    $region32: #{base_conv_forward_nhwc.1} parent=5 // pred_fallthru
      _
    %p917 = scmp.le.s32.totalorder 2, %s9
    // Predicated region
    $region37: #{base_conv_forward_nhwc.1} parent=5 // pred_check
      %p918 = pneg %p917
    $region38: #{base_conv_forward_nhwc.1} parent=5 // pred_check_branch
      %920 = sbr.rel (%p918) target = $region40
    $region39: #{base_conv_forward_nhwc.1} parent=5 // pred_region
      %s921 = ssub.s32 %s9, 2
      // Predicated region
      $region41: #{base_conv_forward_nhwc.1} parent=39 // pred_check
        %p922 = pneg %p130
      $region42: #{base_conv_forward_nhwc.1} parent=39 // pred_check_branch
        %924 = sbr.rel (%p922) target = $region44
      $region43: #{base_conv_forward_nhwc.1} parent=39 // pred_region
        %s925 = smul.u32 32, %s20
        %p926 = scmp.lt.s32.totalorder %s925, 63
        %s927 = scalar_select %p926, %s925, 63
        %p928 = scmp.lt.s32.totalorder %s21, 0
        %s929 = scalar_select %p928, %s21, 0
        %s930 = sadd.s32 %s929, %s927
        %s931 = smul.addr %s930, 8
        %s932 = scalar_lea.vmem %s3, %s931
      $region44: #{base_conv_forward_nhwc.1} parent=39 // pred_fallthru
        _
    $region40: #{base_conv_forward_nhwc.1} parent=5 // pred_fallthru
      _
  $region6: #{base_conv_forward_nhwc.1} parent=0 // loop_footer
    %s13 = sadd.s32 1, %s9
  $region7: #{base_conv_forward_nhwc.1} parent=0 // loop_footer_branch
    %8 = sbr.rel target = $region3
  $region8: #{base_conv_forward_nhwc.1} parent=0 // loop_exit
    _

</llo_original>
